<compile_context>
chip_gen: v6e
topology: v6e:2x2x1
jax: 0.10.0
libtpu: 0.0.40
codegen_flags: <defaults>
</compile_context>

<pallas_src>
import functools

import jax
import jax.numpy as jnp
from jax.experimental import pallas as pl
from jax.experimental.pallas import tpu as pltpu


def _round_up(a, m):
    return ((a + m - 1) // m) * m


# ---------------------------------------------------------------------------
# Kernel 1: per (batch tile i, vocab tile j):
#   logits[i, j] = tanh(x[i]) @ w[:, j] + b[j]     (bf16 x/w, f32 accumulate)
#   online LSE over the j axis -> lse[i] written on the last j tile
# ---------------------------------------------------------------------------
def _logits_lse_kernel(x_ref, w_ref, b_ref, logits_ref, lse_ref,
                       h_ref, m_ref, l_ref):
    j = pl.program_id(1)

    @pl.when(j == 0)
    def _():
        # tanh in f32 (EUP), cached as bf16 for the MXU; computed once per batch tile.
        h_ref[...] = jnp.tanh(x_ref[...].astype(jnp.float32)).astype(h_ref.dtype)
        m_ref[...] = jnp.full_like(m_ref, -jnp.inf)
        l_ref[...] = jnp.zeros_like(l_ref)

    logits = jnp.dot(h_ref[...], w_ref[...],
                     preferred_element_type=jnp.float32) + b_ref[...]
    logits_ref[...] = logits

    # Online log-sum-exp accumulation across vocab tiles.
    m_prev = m_ref[...]
    m_new = jnp.maximum(m_prev, jnp.max(logits, axis=1, keepdims=True))
    l_ref[...] = (l_ref[...] * jnp.exp(m_prev - m_new)
                  + jnp.sum(jnp.exp(logits - m_new), axis=1, keepdims=True))
    m_ref[...] = m_new

    @pl.when(j == pl.num_programs(1) - 1)
    def _():
        lse_ref[...] = m_ref[...] + jnp.log(l_ref[...])


# ---------------------------------------------------------------------------
# Kernel 2: log_softmax = logits - lse   (purely elementwise, both axes parallel)
# ---------------------------------------------------------------------------
def _log_softmax_kernel(logits_ref, lse_ref, o_ref):
    o_ref[...] = logits_ref[...] - lse_ref[...]


def bengio_forward(inputs, emb_table, w, b, *, ngram_size, tb=128, tv=512):
    """inputs: (ngram_size, batch) int32; w: (F, V); returns (batch, V) log-probs."""
    ngram, B = inputs.shape
    assert ngram == ngram_size
    D = emb_table.shape[1]
    F, V = w.shape
    assert F == ngram_size * D

    # Embedding lookup + "concat" as a single gather + reshape (XLA glue).
    # TODO(synk): fuse this gather into the kernel via scalar-prefetched indices +
    # manual DMA gather to avoid the extra HBM round trip of x.
    emb = emb_table[inputs]                                      # (ngram, B, D)
    x = jnp.transpose(emb, (1, 0, 2)).reshape(B, F)              # (B, ngram*D)

    # bf16 activations / weights; f32 bias and accumulation.
    x = x.astype(jnp.bfloat16)
    w_bf = w.astype(jnp.bfloat16)
    b2 = b.reshape(1, V).astype(jnp.float32)

    # Tile sizes: tb multiple of 16 (bf16 sublane packing), tv multiple of 128.
    tb_eff = min(_round_up(tb, 16), _round_up(B, 16))
    tv_eff = min(_round_up(tv, 128), _round_up(V, 128))
    B_pad = _round_up(B, tb_eff)
    V_pad = _round_up(V, tv_eff)

    if B_pad > B:
        x = jnp.pad(x, ((0, B_pad - B), (0, 0)))
    if V_pad > V:
        w_bf = jnp.pad(w_bf, ((0, 0), (0, V_pad - V)))
        # Padded vocab columns get a huge negative bias so they contribute 0 to the LSE.
        b2 = jnp.pad(b2, ((0, 0), (0, V_pad - V)), constant_values=-1e30)

    grid = (B_pad // tb_eff, V_pad // tv_eff)

    logits, lse = pl.pallas_call(
        _logits_lse_kernel,
        out_shape=(jax.ShapeDtypeStruct((B_pad, V_pad), jnp.float32),
                   jax.ShapeDtypeStruct((B_pad, 1), jnp.float32)),
        grid_spec=pltpu.PrefetchScalarGridSpec(
            num_scalar_prefetch=0,
            grid=grid,
            in_specs=[
                pl.BlockSpec((tb_eff, F), lambda i, j: (i, 0)),    # activations
                pl.BlockSpec((F, tv_eff), lambda i, j: (0, j)),    # streamed weight tile
                pl.BlockSpec((1, tv_eff), lambda i, j: (0, j)),    # bias tile
            ],
            out_specs=[
                pl.BlockSpec((tb_eff, tv_eff), lambda i, j: (i, j)),  # raw logits
                pl.BlockSpec((tb_eff, 1), lambda i, j: (i, 0)),       # LSE accumulator
            ],
            scratch_shapes=[
                pltpu.VMEM((tb_eff, F), jnp.bfloat16),   # cached tanh(x)
                pltpu.VMEM((tb_eff, 1), jnp.float32),    # running max
                pltpu.VMEM((tb_eff, 1), jnp.float32),    # running sum
            ],
        ),
        compiler_params=pltpu.CompilerParams(
            dimension_semantics=("parallel", "arbitrary")),
    )(x, w_bf, b2)

    out = pl.pallas_call(
        _log_softmax_kernel,
        out_shape=jax.ShapeDtypeStruct((B_pad, V_pad), jnp.float32),
        grid_spec=pltpu.PrefetchScalarGridSpec(
            num_scalar_prefetch=0,
            grid=grid,
            in_specs=[
                pl.BlockSpec((tb_eff, tv_eff), lambda i, j: (i, j)),
                pl.BlockSpec((tb_eff, 1), lambda i, j: (i, 0)),
            ],
            out_specs=pl.BlockSpec((tb_eff, tv_eff), lambda i, j: (i, j)),
        ),
        compiler_params=pltpu.CompilerParams(
            dimension_semantics=("parallel", "parallel")),
    )(logits, lse)

    return out[:B, :V]


def reference_forward(inputs, emb_table, w, b, *, ngram_size):
    emb = emb_table[inputs]
    x = jnp.concatenate([emb[i] for i in range(ngram_size)], axis=1)
    logits = jnp.tanh(x.astype(jnp.float32)) @ w.astype(jnp.float32) + b.astype(jnp.float32)
    return jax.nn.log_softmax(logits, axis=1)


if __name__ == "__main__":
    # Small shapes consistent with the module.
    vocab_size = 256
    embedding_dim = 32
    context_size = 4
    ngram_size = context_size          # forward() implies context_size == ngram_size
    batch = 8

    key = jax.random.PRNGKey(0)
    k_emb, k_w, k_b, k_in = jax.random.split(key, 4)

    # Deterministic parameter init (shapes from nn.Embedding / nn.Linear, W stored transposed).
    emb_table = jax.random.normal(k_emb, (vocab_size, embedding_dim), dtype=jnp.float32)
    fan_in = embedding_dim * context_size
    w = jax.random.uniform(k_w, (fan_in, vocab_size), dtype=jnp.float32,
                           minval=-1.0 / jnp.sqrt(fan_in), maxval=1.0 / jnp.sqrt(fan_in))
    b = jax.random.uniform(k_b, (vocab_size,), dtype=jnp.float32,
                           minval=-1.0 / jnp.sqrt(fan_in), maxval=1.0 / jnp.sqrt(fan_in))

    # inputs: (ngram_size, batch) word indices, as the PyTorch forward expects.
    inputs = jax.random.randint(k_in, (ngram_size, batch), 0, vocab_size, dtype=jnp.int32)

    # tv=128 so the demo exercises the multi-tile online-LSE path (2 vocab tiles).
    fwd = functools.partial(bengio_forward, ngram_size=ngram_size, tb=128, tv=128)
    out = fwd(inputs, emb_table, w, b)
    out = jax.block_until_ready(out)

    ref = reference_forward(inputs, emb_table, w, b, ngram_size=ngram_size)
    assert out.shape == (batch, vocab_size)
    # bf16 activations/weights -> looser tolerance than the pure-f32 version.
    assert jnp.allclose(out, ref, rtol=5e-2, atol=5e-2), float(jnp.max(jnp.abs(out - ref)))

    print("KERNEL_OK")
</pallas_src>

<mosaic_0001>
module attributes {stable_mosaic.version = 11 : i64} {
  func.func @_logits_lse_kernel(%arg0: i32, %arg1: i32, %arg2: memref<16x128xbf16, #tpu.memory_space<vmem>>, %arg3: memref<128x128xbf16, #tpu.memory_space<vmem>>, %arg4: memref<1x128xf32, #tpu.memory_space<vmem>>, %arg5: memref<16x128xf32, #tpu.memory_space<vmem>>, %arg6: memref<16x1xf32, #tpu.memory_space<vmem>>, %arg7: memref<16x128xbf16, #tpu.memory_space<vmem>>, %arg8: memref<16x1xf32, #tpu.memory_space<vmem>>, %arg9: memref<16x1xf32, #tpu.memory_space<vmem>>) attributes {dimension_semantics = [#tpu.dimension_semantics<parallel>, #tpu.dimension_semantics<arbitrary>], iteration_bounds = array<i64: 1, 2>, scalar_prefetch = 0 : i64, scratch_operands = 3 : i64, tpu.core_type = #tpu.core_type<tc>, window_params = [{transform_indices = @transform_0, window_bounds = array<i64: 16, 128>}, {transform_indices = @transform_1, window_bounds = array<i64: 128, 128>}, {transform_indices = @transform_2, window_bounds = array<i64: 1, 128>}, {transform_indices = @transform_3, window_bounds = array<i64: 16, 128>}, {transform_indices = @transform_4, window_bounds = array<i64: 16, 1>}]} {
    %c0_i32 = arith.constant 0 : i32
    %0 = arith.cmpi eq, %arg1, %c0_i32 : i32
    %1 = arith.extui %0 : i1 to i32
    %c0_i32_0 = arith.constant 0 : i32
    %2 = arith.cmpi ne, %1, %c0_i32_0 : i32
    scf.if %2 {
      %c0_19 = arith.constant 0 : index
      %c0_20 = arith.constant 0 : index
      %29 = vector.load %arg2[%c0_19, %c0_20] : memref<16x128xbf16, #tpu.memory_space<vmem>>, vector<16x128xbf16>
      %30 = arith.extf %29 : vector<16x128xbf16> to vector<16x128xf32>
      %31 = math.tanh %30 : vector<16x128xf32>
      %32 = arith.truncf %31 : vector<16x128xf32> to vector<16x128xbf16>
      %c0_21 = arith.constant 0 : index
      %c0_22 = arith.constant 0 : index
      %33 = vector.load %arg7[%c0_21, %c0_22] : memref<16x128xbf16, #tpu.memory_space<vmem>>, vector<16x128xbf16>
      tpu.vector_store %arg7[%c0_21, %c0_22], %32 {strides = array<i32>} : memref<16x128xbf16, #tpu.memory_space<vmem>>, vector<16x128xbf16>,
      %cst_23 = arith.constant 0xFF800000 : f32
      %34 = vector.broadcast %cst_23 : f32 to vector<16x1xf32>
      %c0_24 = arith.constant 0 : index
      %c0_25 = arith.constant 0 : index
      %35 = vector.load %arg8[%c0_24, %c0_25] : memref<16x1xf32, #tpu.memory_space<vmem>>, vector<16x1xf32>
      tpu.vector_store %arg8[%c0_24, %c0_25], %34 {strides = array<i32>} : memref<16x1xf32, #tpu.memory_space<vmem>>, vector<16x1xf32>,
      %cst_26 = arith.constant 0.000000e+00 : f32
      %36 = vector.broadcast %cst_26 : f32 to vector<16x1xf32>
      %c0_27 = arith.constant 0 : index
      %c0_28 = arith.constant 0 : index
      %37 = vector.load %arg9[%c0_27, %c0_28] : memref<16x1xf32, #tpu.memory_space<vmem>>, vector<16x1xf32>
      tpu.vector_store %arg9[%c0_27, %c0_28], %36 {strides = array<i32>} : memref<16x1xf32, #tpu.memory_space<vmem>>, vector<16x1xf32>,
    } else {
    }
    %c0 = arith.constant 0 : index
    %c0_1 = arith.constant 0 : index
    %3 = vector.load %arg7[%c0, %c0_1] : memref<16x128xbf16, #tpu.memory_space<vmem>>, vector<16x128xbf16>
    %c0_2 = arith.constant 0 : index
    %c0_3 = arith.constant 0 : index
    %4 = vector.load %arg3[%c0_2, %c0_3] : memref<128x128xbf16, #tpu.memory_space<vmem>>, vector<128x128xbf16>
    %cst = arith.constant dense<0.000000e+00> : vector<16x128xf32>
    %5 = tpu.matmul %3, %4, %cst {dimension_numbers = #tpu.dot_dimension_numbers<[1], [0], [0], [1], [0, 0, 1, 1], [], []>} : vector<16x128xbf16>, vector<128x128xbf16>, vector<16x128xf32> -> vector<16x128xf32>
    %c0_4 = arith.constant 0 : index
    %c0_5 = arith.constant 0 : index
    %6 = vector.load %arg4[%c0_4, %c0_5] : memref<1x128xf32, #tpu.memory_space<vmem>>, vector<1x128xf32>
    %7 = vector.broadcast %6 : vector<1x128xf32> to vector<16x128xf32>
    %8 = arith.addf %5, %7 : vector<16x128xf32>
    %c0_6 = arith.constant 0 : index
    %c0_7 = arith.constant 0 : index
    %9 = vector.load %arg5[%c0_6, %c0_7] : memref<16x128xf32, #tpu.memory_space<vmem>>, vector<16x128xf32>
    tpu.vector_store %arg5[%c0_6, %c0_7], %8 {strides = array<i32>} : memref<16x128xf32, #tpu.memory_space<vmem>>, vector<16x128xf32>,
    %c0_8 = arith.constant 0 : index
    %c0_9 = arith.constant 0 : index
    %10 = vector.load %arg8[%c0_8, %c0_9] : memref<16x1xf32, #tpu.memory_space<vmem>>, vector<16x1xf32>
    %cst_10 = arith.constant dense<0xFF800000> : vector<16xf32>
    %11 = vector.multi_reduction <maximumf>, %8, %cst_10 [1] : vector<16x128xf32> to vector<16xf32>
    %12 = vector.shape_cast %11 : vector<16xf32> to vector<16x1xf32>
    %13 = arith.maximumf %10, %12 : vector<16x1xf32>
    %c0_11 = arith.constant 0 : index
    %c0_12 = arith.constant 0 : index
    %14 = vector.load %arg9[%c0_11, %c0_12] : memref<16x1xf32, #tpu.memory_space<vmem>>, vector<16x1xf32>
    %15 = arith.subf %10, %13 : vector<16x1xf32>
    %16 = math.exp %15 : vector<16x1xf32>
    %17 = arith.mulf %14, %16 : vector<16x1xf32>
    %18 = vector.broadcast %13 : vector<16x1xf32> to vector<16x128xf32>
    %19 = arith.subf %8, %18 : vector<16x128xf32>
    %20 = math.exp %19 : vector<16x128xf32>
    %cst_13 = arith.constant dense<0.000000e+00> : vector<16xf32>
    %21 = vector.multi_reduction <add>, %20, %cst_13 [1] : vector<16x128xf32> to vector<16xf32>
    %22 = vector.shape_cast %21 : vector<16xf32> to vector<16x1xf32>
    %23 = arith.addf %17, %22 : vector<16x1xf32>
    %c0_14 = arith.constant 0 : index
    %c0_15 = arith.constant 0 : index
    %24 = vector.load %arg9[%c0_14, %c0_15] : memref<16x1xf32, #tpu.memory_space<vmem>>, vector<16x1xf32>
    tpu.vector_store %arg9[%c0_14, %c0_15], %23 {strides = array<i32>} : memref<16x1xf32, #tpu.memory_space<vmem>>, vector<16x1xf32>,
    %c0_16 = arith.constant 0 : index
    %c0_17 = arith.constant 0 : index
    %25 = vector.load %arg8[%c0_16, %c0_17] : memref<16x1xf32, #tpu.memory_space<vmem>>, vector<16x1xf32>
    tpu.vector_store %arg8[%c0_16, %c0_17], %13 {strides = array<i32>} : memref<16x1xf32, #tpu.memory_space<vmem>>, vector<16x1xf32>,
    %c1_i32 = arith.constant 1 : i32
    %26 = arith.cmpi eq, %arg1, %c1_i32 : i32
    %27 = arith.extui %26 : i1 to i32
    %c0_i32_18 = arith.constant 0 : i32
    %28 = arith.cmpi ne, %27, %c0_i32_18 : i32
    scf.if %28 {
      %c0_19 = arith.constant 0 : index
      %c0_20 = arith.constant 0 : index
      %29 = vector.load %arg8[%c0_19, %c0_20] : memref<16x1xf32, #tpu.memory_space<vmem>>, vector<16x1xf32>
      %c0_21 = arith.constant 0 : index
      %c0_22 = arith.constant 0 : index
      %30 = vector.load %arg9[%c0_21, %c0_22] : memref<16x1xf32, #tpu.memory_space<vmem>>, vector<16x1xf32>
      %31 = math.log %30 : vector<16x1xf32>
      %32 = arith.addf %29, %31 : vector<16x1xf32>
      %c0_23 = arith.constant 0 : index
      %c0_24 = arith.constant 0 : index
      %33 = vector.load %arg6[%c0_23, %c0_24] : memref<16x1xf32, #tpu.memory_space<vmem>>, vector<16x1xf32>
      tpu.vector_store %arg6[%c0_23, %c0_24], %32 {strides = array<i32>} : memref<16x1xf32, #tpu.memory_space<vmem>>, vector<16x1xf32>,
    } else {
    }
    return
  }
  func.func @transform_0(%arg0: i32, %arg1: i32) -> (i32, i32) {
    %c0_i32 = arith.constant 0 : i32
    %c0_i32_0 = arith.constant 0 : i32
    return %arg0, %c0_i32 : i32, i32
  }
  func.func @transform_1(%arg0: i32, %arg1: i32) -> (i32, i32) {
    %c0_i32 = arith.constant 0 : i32
    %c0_i32_0 = arith.constant 0 : i32
    return %c0_i32, %arg1 : i32, i32
  }
  func.func @transform_2(%arg0: i32, %arg1: i32) -> (i32, i32) {
    %c0_i32 = arith.constant 0 : i32
    %c0_i32_0 = arith.constant 0 : i32
    return %c0_i32, %arg1 : i32, i32
  }
  func.func @transform_3(%arg0: i32, %arg1: i32) -> (i32, i32) {
    %c0_i32 = arith.constant 0 : i32
    return %arg0, %arg1 : i32, i32
  }
  func.func @transform_4(%arg0: i32, %arg1: i32) -> (i32, i32) {
    %c0_i32 = arith.constant 0 : i32
    %c0_i32_0 = arith.constant 0 : i32
    return %arg0, %c0_i32 : i32, i32
  }
}

</mosaic_0001>

<llo_original>
// kernel: tpu_custom_call.1
$region0: #{tpu_custom_call.1}
  #allocation0 [shape = 'u32[]', space=smem, size = 0x4, offset = 0x4, fixed_abs, tag = 'smem constant byte address 0x4 - core index']
  #allocation1 [shape = 'u32[144,128]{1,0:T(1,128)}', space=vmem, size = 0x12000, scoped, tag = 'internal scratch']
  #allocation2 [shape = 'bf16[16,128]{1,0:T(8,128)(2,1)}', space=vmem, size = 0x1000, scoped, tag = 'scratch operand']
  #allocation3 [shape = 'f32[16,1]{1,0:T(8,128)}', space=vmem, size = 0x2000, scoped, tag = 'scratch operand']
  #allocation4 [shape = 'f32[16,1]{1,0:T(8,128)}', space=vmem, size = 0x2000, scoped, tag = 'scratch operand']
  %s0 = inlined_call_operand.hbm [shape: bf16[16,128], index: 0, kind: input, shape index: {}]
  %s1 = inlined_call_operand.hbm [shape: bf16[128,256], index: 1, kind: input, shape index: {}]
  %s2 = inlined_call_operand.vmem [shape: f32[1,256], index: 2, kind: input, shape index: {}]
  %s3 = inlined_call_operand.hbm [shape: f32[16,256], index: 3, kind: output, shape index: {0}]
  %s4 = inlined_call_operand.vmem [shape: f32[16,1], index: 4, kind: output, shape index: {1}]
  %5 = xla_tuple %s3, %s4
  %s6 = sld [smem:[#allocation0]]
  $region69: #{tpu_custom_call.1} parent=0
    _
  %s8 = ssub.s32 1, %s6
  %s9 = scalar_select 0, %s8, %s6
  $region1: #{tpu_custom_call.1} parent=0
    #allocation5 [shape = 'u8[4096]{0}', space=vmem, size = 0x1000, scoped, tag = 'input window, operand 0, single buffered']
    #allocation6 [shape = 's32[2]{0}', space=sflag, size = 0x8, scoped, tag = 'scoped memory for tpu_custom_call.1']
    #allocation7 [shape = 's32[2]{0}', space=sflag, size = 0x8, scoped, tag = 'scoped memory for tpu_custom_call.1']
    #allocation8 [shape = 'u8[65536]{0}', space=vmem, size = 0x10000, scoped, tag = 'input window, operand 1']
    #allocation9 [shape = 's32[2]{0}', space=sflag, size = 0x8, scoped, tag = 'scoped memory for tpu_custom_call.1']
    #allocation10 [shape = 'u8[16384]{0}', space=vmem, size = 0x4000, scoped, tag = 'output window, operand 0']
    %10 = vsyncpa [#allocation6], 0
    %11 = vsyncpa [#allocation9], 0
    %s12 = scalar_lea.sflag [#allocation9], 1
    %13 = vsyncpa %s12, 0
    %14 = vsyncpa [#allocation7], 0
    %s15 = scalar_lea.sflag [#allocation7], 1
    %16 = vsyncpa %s15, 0
    loop: start=0, step=1, limit=4
    $region2: #{tpu_custom_call.1} parent=1 // loop_pre_header
      _
    $region3: #{tpu_custom_call.1} parent=1 // loop_header
      %s18 = sphi 0, %s22
      %p19 = scmp.ge.s32.totalorder %s18, 4
      %s25 = sphi 0, %s37
      %s26 = sphi 0, %s33
      %s27 = sphi 0, %s25
      %s28 = sphi 0, %s26
      %s29 = sphi 0, %s27
      %s30 = sphi 0, %s28
      %s40 = sphi 0, %s42
      %s43 = sphi 0, %s40
      %s44 = sphi 0, %s43
      %s60 = sphi 0, %s44
      %s66 = sphi 0, %s68
      %s69 = sphi 0, %s66
      %s70 = sphi 0, %s69
      %s86 = sphi 0, %s70
      %s92 = sphi 0, %s94
      %s95 = sphi 0, %s92
      %s96 = sphi 0, %s95
      %s112 = sphi 0, %s96
      %s120 = sphi 0, %s122
      %s123 = sphi 0, %s120
      %s124 = sphi 0, %s123
      %s140 = sphi 0, %s124
      %s146 = sphi 0, %s148
      %s149 = sphi 0, %s146
      %s150 = sphi 0, %s149
      %s166 = sphi 0, %s150
    $region4: #{tpu_custom_call.1} parent=1 // loop_header_branch
      %21 = sbr.rel (%p19) target = $region8
    $region5: #{tpu_custom_call.1} parent=1 // loop_body
      %s23 = ssub.s32 %s18, 1
      %s24 = ssub.s32 %s18, 2
      %s31 = sadd.s32 1, %s26
      %p32 = scmp.ge.s32.totalorder %s31, 2
      %s33 = scalar_select %p32, 0, %s31
      %s34 = sadd.s32 1, %s25
      %s35 = scalar_select %p32, %s34, %s25
      %p36 = scmp.ge.s32.totalorder %s35, 1
      %s37 = scalar_select %p36, 0, %s35
      %s38 = ssub.s32 %s25, %s37
      %p39 = scmp.eq.s32.totalorder %s38, 0
      %s41 = sadd.s32 %s40, 1
      %s42 = scalar_select %p39, %s40, %s41
      %p45 = pneg %p39
      %p46 = scmp.eq.s32.totalorder %s18, 1
      %p47 = por %p45, %p46
      %p48 = scmp.ne.s32.totalorder %s40, %s43
      %p49 = scmp.eq.s32.totalorder %s18, 0
      %p50 = por %p48, %p49
      %p51 = scmp.ne.s32.totalorder %s40, %s43
      %p52 = scmp.eq.s32.totalorder %s23, 1
      %p53 = por %p51, %p52
      %p54 = scmp.ne.s32.totalorder %s43, %s44
      %p55 = scmp.eq.s32.totalorder %s23, 0
      %p56 = por %p54, %p55
      %p57 = scmp.ne.s32.totalorder %s43, %s44
      %p58 = scmp.eq.s32.totalorder %s24, 1
      %p59 = por %p57, %p58
      %p61 = scmp.ne.s32.totalorder %s44, %s60
      %p62 = scmp.eq.s32.totalorder %s24, 0
      %p63 = por %p61, %p62
      %s64 = ssub.s32 %s26, %s33
      %p65 = scmp.eq.s32.totalorder %s64, 0
      %s67 = sadd.s32 %s66, 1
      %s68 = scalar_select %p65, %s66, %s67
      %p71 = pneg %p65
      %p72 = scmp.eq.s32.totalorder %s18, 1
      %p73 = por %p71, %p72
      %p74 = scmp.ne.s32.totalorder %s66, %s69
      %p75 = scmp.eq.s32.totalorder %s18, 0
      %p76 = por %p74, %p75
      %p77 = scmp.ne.s32.totalorder %s66, %s69
      %p78 = scmp.eq.s32.totalorder %s23, 1
      %p79 = por %p77, %p78
      %p80 = scmp.ne.s32.totalorder %s69, %s70
      %p81 = scmp.eq.s32.totalorder %s23, 0
      %p82 = por %p80, %p81
      %p83 = scmp.ne.s32.totalorder %s69, %s70
      %p84 = scmp.eq.s32.totalorder %s24, 1
      %p85 = por %p83, %p84
      %p87 = scmp.ne.s32.totalorder %s70, %s86
      %p88 = scmp.eq.s32.totalorder %s24, 0
      %p89 = por %p87, %p88
      %s90 = ssub.s32 %s26, %s33
      %p91 = scmp.eq.s32.totalorder %s90, 0
      %s93 = sadd.s32 %s92, 1
      %s94 = scalar_select %p91, %s92, %s93
      %p97 = pneg %p91
      %p98 = scmp.eq.s32.totalorder %s18, 1
      %p99 = por %p97, %p98
      %p100 = scmp.ne.s32.totalorder %s92, %s95
      %p101 = scmp.eq.s32.totalorder %s18, 0
      %p102 = por %p100, %p101
      %p103 = scmp.ne.s32.totalorder %s92, %s95
      %p104 = scmp.eq.s32.totalorder %s23, 1
      %p105 = por %p103, %p104
      %p106 = scmp.ne.s32.totalorder %s95, %s96
      %p107 = scmp.eq.s32.totalorder %s23, 0
      %p108 = por %p106, %p107
      %p109 = scmp.ne.s32.totalorder %s95, %s96
      %p110 = scmp.eq.s32.totalorder %s24, 1
      %p111 = por %p109, %p110
      %p113 = scmp.ne.s32.totalorder %s96, %s112
      %p114 = scmp.eq.s32.totalorder %s24, 0
      %p115 = por %p113, %p114
      %s116 = ssub.s32 %s25, %s37
      %s117 = ssub.s32 %s26, %s33
      %s118 = sor.u32 %s116, %s117
      %p119 = scmp.eq.s32.totalorder %s118, 0
      %s121 = sadd.s32 %s120, 1
      %s122 = scalar_select %p119, %s120, %s121
      %p125 = pneg %p119
      %p126 = scmp.eq.s32.totalorder %s18, 1
      %p127 = por %p125, %p126
      %p128 = scmp.ne.s32.totalorder %s120, %s123
      %p129 = scmp.eq.s32.totalorder %s18, 0
      %p130 = por %p128, %p129
      %p131 = scmp.ne.s32.totalorder %s120, %s123
      %p132 = scmp.eq.s32.totalorder %s23, 1
      %p133 = por %p131, %p132
      %p134 = scmp.ne.s32.totalorder %s123, %s124
      %p135 = scmp.eq.s32.totalorder %s23, 0
      %p136 = por %p134, %p135
      %p137 = scmp.ne.s32.totalorder %s123, %s124
      %p138 = scmp.eq.s32.totalorder %s24, 1
      %p139 = por %p137, %p138
      %p141 = scmp.ne.s32.totalorder %s124, %s140
      %p142 = scmp.eq.s32.totalorder %s24, 0
      %p143 = por %p141, %p142
      %s144 = ssub.s32 %s25, %s37
      %p145 = scmp.eq.s32.totalorder %s144, 0
      %s147 = sadd.s32 %s146, 1
      %s148 = scalar_select %p145, %s146, %s147
      %p151 = pneg %p145
      %p152 = scmp.eq.s32.totalorder %s18, 1
      %p153 = por %p151, %p152
      %p154 = scmp.ne.s32.totalorder %s146, %s149
      %p155 = scmp.eq.s32.totalorder %s18, 0
      %p156 = por %p154, %p155
      %p157 = scmp.ne.s32.totalorder %s146, %s149
      %p158 = scmp.eq.s32.totalorder %s23, 1
      %p159 = por %p157, %p158
      %p160 = scmp.ne.s32.totalorder %s149, %s150
      %p161 = scmp.eq.s32.totalorder %s23, 0
      %p162 = por %p160, %p161
      %p163 = scmp.ne.s32.totalorder %s149, %s150
      %p164 = scmp.eq.s32.totalorder %s24, 1
      %p165 = por %p163, %p164
      %p167 = scmp.ne.s32.totalorder %s150, %s166
      %p168 = scmp.eq.s32.totalorder %s24, 0
      %p169 = por %p167, %p168
      %p170 = scmp.le.s32.totalorder 1, %s18
      %p171 = scmp.lt.s32.totalorder %s18, 3
      %p172 = pnand %p170, %p171
      %p173 = pneg %p172
      // Predicated region
      $region9: #{tpu_custom_call.1} parent=5 // pred_check
        _
      $region10: #{tpu_custom_call.1} parent=5 // pred_check_branch
        %175 = sbr.rel (%p172) target = $region12
      $region11: #{tpu_custom_call.1} parent=5 // pred_region
        %s176 = ssub.s32 %s18, 1
        // Predicated region
        $region13: #{tpu_custom_call.1} parent=11 // pred_check
          %p177 = pneg %p56
        $region14: #{tpu_custom_call.1} parent=11 // pred_check_branch
          %179 = sbr.rel (%p177) target = $region16
        $region15: #{tpu_custom_call.1} parent=11 // pred_region
          %s180 = smul.u32 2, %s27
          %s182 = ssub.s32 128, 128
          %183 = vsyncadd [#allocation6], %s182
          %s184 = smul.addr %s180, 64
          %s185 = scalar_lea.hbm %s0, %s184
          %s186 = sshll.u32 [#allocation5], 4
          %s187 = int_to_ptr.vmem [resolvable:$true] %s186
          %192 = dma.hbm_to_vmem [thread:$0]  %s185, 128, %s187, [#allocation6], 64, 64, 4
        $region16: #{tpu_custom_call.1} parent=11 // pred_fallthru
          _
      $region12: #{tpu_custom_call.1} parent=5 // pred_fallthru
        _
      %p193 = scmp.lt.s32.totalorder %s18, 2
      // Predicated region
      $region17: #{tpu_custom_call.1} parent=5 // pred_check
        %p194 = pneg %p193
      $region18: #{tpu_custom_call.1} parent=5 // pred_check_branch
        %196 = sbr.rel (%p194) target = $region20
      $region19: #{tpu_custom_call.1} parent=5 // pred_region
        // Predicated region
        $region21: #{tpu_custom_call.1} parent=19 // pred_check
          %p197 = pneg %p76
        $region22: #{tpu_custom_call.1} parent=19 // pred_check_branch
          %199 = sbr.rel (%p197) target = $region24
        $region23: #{tpu_custom_call.1} parent=19 // pred_region
          %s200 = sand.u32 %s66, 1
          %s201 = scalar_lea.sflag [#allocation9], %s200
          %s202 = sand.u32 %s66, 1
          %s203 = smul.addr %s202, 64
          %s204 = scalar_lea.vmem [#allocation8], %s203
          %s206 = ssub.s32 1024, 1024
          %207 = vsyncadd %s201, %s206
          %s208 = smul.addr %s26, 64
          %s209 = scalar_lea.hbm %s1, %s208
          %s210 = sshll.u32 %s204, 4
          %s211 = int_to_ptr.vmem [resolvable:$true] %s210
          %216 = dma.hbm_to_vmem [thread:$0]  %s209, 1024, %s211, %s201, 128, 64, 4
        $region24: #{tpu_custom_call.1} parent=19 // pred_fallthru
          _
        // Predicated region
        $region25: #{tpu_custom_call.1} parent=19 // pred_check
          %p217 = pneg %p102
        $region26: #{tpu_custom_call.1} parent=19 // pred_check_branch
          %219 = sbr.rel (%p217) target = $region28
        $region27: #{tpu_custom_call.1} parent=19 // pred_region
          %p220 = scmp.lt.s32.totalorder %s26, 1
          %s221 = scalar_select %p220, %s26, 1
          %s222 = scalar_lea.vmem %s2, %s221
        $region28: #{tpu_custom_call.1} parent=19 // pred_fallthru
          _
      $region20: #{tpu_custom_call.1} parent=5 // pred_fallthru
        _
      %p223 = scmp.le.s32.totalorder 1, %s18
      %p224 = scmp.lt.s32.totalorder %s18, 3
      %p225 = pnand %p223, %p224
      %p226 = pneg %p225
      // Predicated region
      $region29: #{tpu_custom_call.1} parent=5 // pred_check
        _
      $region30: #{tpu_custom_call.1} parent=5 // pred_check_branch
        %228 = sbr.rel (%p225) target = $region32
      $region31: #{tpu_custom_call.1} parent=5 // pred_region
        %s229 = ssub.s32 %s18, 1
        // Predicated region
        $region33: #{tpu_custom_call.1} parent=31 // pred_check
          %p230 = pneg %p56
        $region34: #{tpu_custom_call.1} parent=31 // pred_check_branch
          %232 = sbr.rel (%p230) target = $region36
        $region35: #{tpu_custom_call.1} parent=31 // pred_region
          %233 = dma.done [#allocation6], 128
        $region36: #{tpu_custom_call.1} parent=31 // pred_fallthru
          _
        %s234 = sand.u32 %s69, 1
        %s235 = scalar_lea.sflag [#allocation9], %s234
        %s236 = sand.u32 %s69, 1
        %s237 = smul.addr %s236, 64
        %s238 = scalar_lea.vmem [#allocation8], %s237
        // Predicated region
        $region37: #{tpu_custom_call.1} parent=31 // pred_check
          %p239 = pneg %p82
        $region38: #{tpu_custom_call.1} parent=31 // pred_check_branch
          %241 = sbr.rel (%p239) target = $region40
        $region39: #{tpu_custom_call.1} parent=31 // pred_region
          %242 = dma.done %s235, 1024
        $region40: #{tpu_custom_call.1} parent=31 // pred_fallthru
          _
        %p243 = pneg %p56
        %p244 = pneg %p53
        %s245 = sand.u32 %s69, 1
        %s246 = scalar_lea.sflag [#allocation9], %s245
        %s247 = sand.u32 %s69, 1
        %s248 = smul.addr %s247, 64
        %s249 = scalar_lea.vmem [#allocation8], %s248
        %p250 = pneg %p82
        %p251 = pneg %p79
        %p252 = scmp.lt.s32.totalorder %s28, 1
        %s253 = scalar_select %p252, %s28, 1
        %s254 = scalar_lea.vmem %s2, %s253
        %p255 = pneg %p108
        %p256 = pneg %p105
        %p257 = pneg %p136
        %p258 = pneg %p133
        %s259 = sand.u32 %s123, 1
        %s260 = scalar_lea.sflag [#allocation7], %s259
        %s261 = sand.u32 %s123, 1
        %s262 = smul.addr %s261, 16
        %s263 = scalar_lea.vmem [#allocation10], %s262
        %p264 = pneg %p162
        %p265 = pneg %p159
        %s266 = smul.u32 2, %s27
        %p267 = scmp.lt.s32.totalorder %s266, 1
        %s268 = scalar_select %p267, %s266, 1
        %s269 = smul.addr %s268, 8
        %s270 = scalar_lea.vmem %s4, %s269
        %s271 = smul.u32 2, %s27
        %p272 = scmp.lt.s32.totalorder %s28, 1
        %s273 = scalar_select %p272, %s28, 1
        %s274 = scalar_lea.vmem %s2, %s273
        %s275 = smul.u32 2, %s27
        %s276 = smul.u32 2, %s27
        %p277 = scmp.lt.s32.totalorder %s276, 1
        %s278 = scalar_select %p277, %s276, 1
        %s279 = smul.addr %s278, 8
        %s280 = scalar_lea.vmem %s4, %s279
        %s281 = smul.u32 2, %s27
        %p283 = scmp.eq.s32.totalorder %s28, 0
        // Predicated region
        $region41: #{tpu_custom_call.1} parent=31 // pred_check
          %p284 = pneg %p283
        $region42: #{tpu_custom_call.1} parent=31 // pred_check_branch
          %286 = sbr.rel (%p284) target = $region44
        $region43: #{tpu_custom_call.1} parent=31 // pred_region
          %v287 = vld [vmem:[#allocation5] sm:$0xf]
          %v288 = vld [vmem:[#allocation5 + $0x4] sm:$0xf]
          %v289 = vunpack.c.l.bf16 %v287
          %v290 = vunpack.c.l.bf16 %v288
          %v291 = vtanh.pop %v289
          %v292 = vtanh.pop %v290
          %v293 = vpack.c.bf16 %v292, %v291
          %v295 = vunpack.c.l.b16 %v293
          %v296 = vunpack.c.h.b16 %v293
          %v297 = vpack.c.b16 %v295, %v295
          %v298 = vpack.c.b16 %v296, %v296
          %301 = vst [vmem:[#allocation2] sm:$0xf] %v297
          %302 = vst [vmem:[#allocation2 + $0x4] sm:$0xf] %v298
          %vm303 = vcmask 7168
          %304 = vst.msk [vmem:[#allocation3] sm:$0xff] %vm303, -inf
          %305 = vst.msk [vmem:[#allocation3 + $0x8] sm:$0xff] %vm303, -inf
          %306 = vst.msk [vmem:[#allocation4] sm:$0xff] %vm303, 0.0
          %307 = vst.msk [vmem:[#allocation4 + $0x8] sm:$0xff] %vm303, 0.0
        $region44: #{tpu_custom_call.1} parent=31 // pred_fallthru
          _
        %v308 = vld [vmem:[#allocation2] sm:$0xf]
        %v309 = vld [vmem:[#allocation2 + $0x4] sm:$0xf]
        %v310 = vld [vmem:[%s238] sm:$0xf]
        %v311 = vld [vmem:[%s238 + $0x4] sm:$0xf]
        %v312 = vld [vmem:[%s238 + $0x8] sm:$0xf]
        %v313 = vld [vmem:[%s238 + $0xc] sm:$0xf]
        %v314 = vld [vmem:[%s238 + $0x10] sm:$0xf]
        %v315 = vld [vmem:[%s238 + $0x14] sm:$0xf]
        %v316 = vld [vmem:[%s238 + $0x18] sm:$0xf]
        %v317 = vld [vmem:[%s238 + $0x1c] sm:$0xf]
        %v318 = vld [vmem:[%s238 + $0x20] sm:$0xf]
        %v319 = vld [vmem:[%s238 + $0x24] sm:$0xf]
        %v320 = vld [vmem:[%s238 + $0x28] sm:$0xf]
        %v321 = vld [vmem:[%s238 + $0x2c] sm:$0xf]
        %v322 = vld [vmem:[%s238 + $0x30] sm:$0xf]
        %v323 = vld [vmem:[%s238 + $0x34] sm:$0xf]
        %v324 = vld [vmem:[%s238 + $0x38] sm:$0xf]
        %v325 = vld [vmem:[%s238 + $0x3c] sm:$0xf]
        %v326 = vld [vmem:[%s274] sm:$0x1]
        %v328 = vlaneseq
        %v329 = vshrl.u32 %v328, 7
        %v330 = vsub.s32 0, %v329
        %v331 = vrot.slane %v326, %v330
        %v335 = vunpack.c.l.b16 %v308
        %v336 = vunpack.c.l.b16 %v309
        %v337 = vpack.c.b16 %v336, %v335
        %v355 = vunpack.c.l.b16 %v310
        %v356 = vunpack.c.l.b16 %v311
        %v357 = vunpack.c.l.b16 %v312
        %v358 = vunpack.c.l.b16 %v313
        %v359 = vunpack.c.l.b16 %v314
        %v360 = vunpack.c.l.b16 %v315
        %v361 = vunpack.c.l.b16 %v316
        %v362 = vunpack.c.l.b16 %v317
        %v363 = vunpack.c.l.b16 %v318
        %v364 = vunpack.c.l.b16 %v319
        %v365 = vunpack.c.l.b16 %v320
        %v366 = vunpack.c.l.b16 %v321
        %v367 = vunpack.c.l.b16 %v322
        %v368 = vunpack.c.l.b16 %v323
        %v369 = vunpack.c.l.b16 %v324
        %v370 = vunpack.c.l.b16 %v325
        %v371 = vpack.c.b16 %v356, %v355
        %v372 = vpack.c.b16 %v358, %v357
        %v373 = vpack.c.b16 %v360, %v359
        %v374 = vpack.c.b16 %v362, %v361
        %v375 = vpack.c.b16 %v364, %v363
        %v376 = vpack.c.b16 %v366, %v365
        %v377 = vpack.c.b16 %v368, %v367
        %v378 = vpack.c.b16 %v370, %v369
        %387 = vmatprep.subr.bf16.mxu0 0
        %388 = vmatpush1.bf16.msra.mxu0 %v378
        %389 = vmatprep.subr.bf16.mxu0 0
        %390 = vmatpush1.bf16.msra.mxu0 %v377
        %391 = vmatprep.subr.bf16.mxu0 0
        %392 = vmatpush1.bf16.msra.mxu0 %v376
        %393 = vmatprep.subr.bf16.mxu0 0
        %394 = vmatpush1.bf16.msra.mxu0 %v375
        %395 = vmatprep.subr.bf16.mxu0 0
        %396 = vmatpush1.bf16.msra.mxu0 %v374
        %397 = vmatprep.subr.bf16.mxu0 0
        %398 = vmatpush1.bf16.msra.mxu0 %v373
        %399 = vmatprep.subr.bf16.mxu0 0
        %400 = vmatpush1.bf16.msra.mxu0 %v372
        %401 = vmatprep.subr.bf16.mxu0 0
        %402 = vmatpush1.bf16.msra.mxu0 %v371
        %403 = vmatprep.subr.bf16.mxu0 0
        %404 = vmatpush2.bf16.msra.mxu0 0
        %405 = vmatprep.subr.bf16.mxu0 0
        %406 = vmatpush2.bf16.msra.mxu0 0
        %407 = vmatprep.subr.bf16.mxu0 0
        %408 = vmatpush2.bf16.msra.mxu0 0
        %409 = vmatprep.subr.bf16.mxu0 0
        %410 = vmatpush2.bf16.msra.mxu0 0
        %411 = vmatprep.subr.bf16.mxu0 0
        %412 = vmatpush2.bf16.msra.mxu0 0
        %413 = vmatprep.subr.bf16.mxu0 0
        %414 = vmatpush2.bf16.msra.mxu0 0
        %415 = vmatprep.subr.bf16.mxu0 0
        %416 = vmatpush2.bf16.msra.mxu0 0
        %417 = vmatprep.subr.bf16.mxu0 0
        %418 = vmatpush2.bf16.msra.mxu0 0
        %419 = vmatprep.mubr.bf16.mxu0 0
        %420 = vmatmul.mubr.bf16.gmra.mxu0 %v337
        %v421 = vpop.f32.mrf.mxu0
        %v422 = vadd.f32 %v331, %v421
        %v423 = vpop.f32.mrf.mxu0
        %v424 = vpop.f32.mrf.mxu0
        %v425 = vadd.f32 %v331, %v424
        %v426 = vpop.f32.mrf.mxu0
        %427 = vdwg.mxu0
        %428 = vst [vmem:[%s263] sm:$0xff] %v422
        %429 = vst [vmem:[%s263 + $0x8] sm:$0xff] %v425
        %v430 = vld [vmem:[#allocation3] sm:$0xff]
        %v431 = vld [vmem:[#allocation3 + $0x8] sm:$0xff]
        %432 = vmax.xlane.f32.xlu0 %v422
        %v433 = vpop.xlane.xlu0 %432
        %434 = vmax.xlane.f32.xlu0 %v425
        %v435 = vpop.xlane.xlu0 %434
        %v436 = vmax.f32 %v430, %v433
        %v437 = vmax.f32 %v431, %v435
        %v438 = vld [vmem:[#allocation4] sm:$0xff]
        %v439 = vld [vmem:[#allocation4 + $0x8] sm:$0xff]
        %v440 = vsub.f32 %v430, %v436
        %v441 = vsub.f32 %v431, %v437
        %v442 = vmul.f32 %v440, 1.442695
        %v443 = vpow.pop %v442
        %v444 = vmul.f32 %v441, 1.442695
        %v445 = vpow.pop %v444
        %v446 = vmul.f32 %v438, %v443
        %v447 = vmul.f32 %v439, %v445
        %449 = vset.pattern.permute.xlu0 0
        %450 = vperm.xlu0 %449, %v436
        %v451 = vpop.permute.xlu0 %450
        %454 = vset.pattern.permute.xlu0 0
        %455 = vperm.xlu0 %454, %v437
        %v456 = vpop.permute.xlu0 %455
        %v458 = vsub.f32 %v422, %v451
        %v459 = vsub.f32 %v425, %v456
        %v460 = vmul.f32 %v458, 1.442695
        %v461 = vpow.pop %v460
        %v462 = vmul.f32 %v459, 1.442695
        %v463 = vpow.pop %v462
        %464 = vadd.xlane.f32.xlu0 %v461
        %v465 = vpop.xlane.xlu0 %464
        %466 = vadd.xlane.f32.xlu0 %v463
        %v467 = vpop.xlane.xlu0 %466
        %v468 = vadd.f32 %v446, %v465
        %v469 = vadd.f32 %v447, %v467
        %vm470 = vcmask 7168
        %471 = vst.msk [vmem:[#allocation4] sm:$0xff] %vm470, %v468
        %472 = vst.msk [vmem:[#allocation4 + $0x8] sm:$0xff] %vm470, %v469
        %473 = vst.msk [vmem:[#allocation3] sm:$0xff] %vm470, %v436
        %474 = vst.msk [vmem:[#allocation3 + $0x8] sm:$0xff] %vm470, %v437
        %p475 = scmp.eq.s32.totalorder %s28, 1
        // Predicated region
        $region45: #{tpu_custom_call.1} parent=31 // pred_check
          %p476 = pneg %p475
        $region46: #{tpu_custom_call.1} parent=31 // pred_check_branch
          %478 = sbr.rel (%p476) target = $region48
        $region47: #{tpu_custom_call.1} parent=31 // pred_region
          %v479 = vld [vmem:[#allocation3] sm:$0xff]
          %v480 = vld [vmem:[#allocation3 + $0x8] sm:$0xff]
          %v481 = vld [vmem:[#allocation4] sm:$0xff]
          %v482 = vld [vmem:[#allocation4 + $0x8] sm:$0xff]
          %v483 = vlog2.pop %v481
          %v484 = vmul.f32 %v483, 0.6931472
          %v485 = vlog2.pop %v482
          %v486 = vmul.f32 %v485, 0.6931472
          %v487 = vadd.f32 %v479, %v484
          %v488 = vadd.f32 %v480, %v486
          %489 = vst.msk [vmem:[%s280] sm:$0xff] %vm470, %v487
          %490 = vst.msk [vmem:[%s280 + $0x8] sm:$0xff] %vm470, %v488
        $region48: #{tpu_custom_call.1} parent=31 // pred_fallthru
          _
        %s491 = sand.u32 %s123, 1
        %s492 = scalar_lea.sflag [#allocation7], %s491
        %s493 = sand.u32 %s123, 1
        %s494 = smul.addr %s493, 16
        %s495 = scalar_lea.vmem [#allocation10], %s494
        %s496 = smul.u32 2, %s27
        %p497 = scmp.lt.s32.totalorder %s496, 1
        %s498 = scalar_select %p497, %s496, 1
        %s499 = smul.addr %s498, 8
        %s500 = scalar_lea.vmem %s4, %s499
        // Predicated region
        $region49: #{tpu_custom_call.1} parent=31 // pred_check
          %p501 = pneg %p133
        $region50: #{tpu_custom_call.1} parent=31 // pred_check_branch
          %503 = sbr.rel (%p501) target = $region52
        $region51: #{tpu_custom_call.1} parent=31 // pred_region
          %s504 = smul.u32 2, %s27
          %s506 = ssub.s32 256, 256
          %507 = vsyncadd %s492, %s506
          %s508 = smul.addr %s504, 2
          %s509 = sadd.s32 %s28, %s508
          %s510 = smul.addr %s509, 128
          %s511 = scalar_lea.hbm %s3, %s510
          %s512 = sshll.u32 %s495, 4
          %s513 = int_to_ptr.vmem [resolvable:$true] %s512
          %518 = dma.vmem_to_hbm [thread:$0]  %s513, 256, %s511, %s492, 128, 256, 8
        $region52: #{tpu_custom_call.1} parent=31 // pred_fallthru
          _
        // Predicated region
        $region53: #{tpu_custom_call.1} parent=31 // pred_check
          %p519 = pneg %p159
        $region54: #{tpu_custom_call.1} parent=31 // pred_check_branch
          %521 = sbr.rel (%p519) target = $region56
        $region55: #{tpu_custom_call.1} parent=31 // pred_region
          %s522 = smul.u32 2, %s27
        $region56: #{tpu_custom_call.1} parent=31 // pred_fallthru
          _
        // Predicated region
        $region57: #{tpu_custom_call.1} parent=31 // pred_check
          %p523 = pneg %p159
        $region58: #{tpu_custom_call.1} parent=31 // pred_check_branch
          %525 = sbr.rel (%p523) target = $region60
        $region59: #{tpu_custom_call.1} parent=31 // pred_region
          %s526 = smul.u32 2, %s27
          %p527 = scmp.lt.s32.totalorder %s526, 1
          %s528 = scalar_select %p527, %s526, 1
          %s529 = smul.addr %s528, 8
          %s530 = scalar_lea.vmem %s4, %s529
        $region60: #{tpu_custom_call.1} parent=31 // pred_fallthru
          _
      $region32: #{tpu_custom_call.1} parent=5 // pred_fallthru
        _
      %p531 = scmp.le.s32.totalorder 2, %s18
      // Predicated region
      $region61: #{tpu_custom_call.1} parent=5 // pred_check
        %p532 = pneg %p531
      $region62: #{tpu_custom_call.1} parent=5 // pred_check_branch
        %534 = sbr.rel (%p532) target = $region64
      $region63: #{tpu_custom_call.1} parent=5 // pred_region
        %s535 = ssub.s32 %s18, 2
        // Predicated region
        $region65: #{tpu_custom_call.1} parent=63 // pred_check
          %p536 = pneg %p139
        $region66: #{tpu_custom_call.1} parent=63 // pred_check_branch
          %538 = sbr.rel (%p536) target = $region68
        $region67: #{tpu_custom_call.1} parent=63 // pred_region
          %s539 = sand.u32 %s124, 1
          %s540 = scalar_lea.sflag [#allocation7], %s539
          %s541 = sand.u32 %s124, 1
          %s542 = smul.addr %s541, 16
          %s543 = scalar_lea.vmem [#allocation10], %s542
          %544 = dma.done %s540, 256
        $region68: #{tpu_custom_call.1} parent=63 // pred_fallthru
          _
      $region64: #{tpu_custom_call.1} parent=5 // pred_fallthru
        _
    $region6: #{tpu_custom_call.1} parent=1 // loop_footer
      %s22 = sadd.s32 1, %s18
    $region7: #{tpu_custom_call.1} parent=1 // loop_footer_branch
      %17 = sbr.rel target = $region3
    $region8: #{tpu_custom_call.1} parent=1 // loop_exit
      _
    %545 = vsyncpa [#allocation6], 1
    %s546 = scalar_lea.sflag [#allocation6], 1
    %547 = vsyncpa %s546, 1
    %548 = vsyncpa [#allocation9], 1
    %s549 = scalar_lea.sflag [#allocation9], 1
    %550 = vsyncpa %s549, 1
    %551 = vsyncpa [#allocation7], 1
    %s552 = scalar_lea.sflag [#allocation7], 1
    %553 = vsyncpa %s552, 1

</llo_original>
